<compile_context>
chip_gen: v5e
topology: v5e:2x2
jax: 0.10.0
libtpu: 0.0.40
codegen_flags: <defaults>
</compile_context>

<pallas_src>
import functools

import jax
import jax.numpy as jnp
from jax.experimental import pallas as pl
from jax.experimental.pallas import tpu as pltpu


# ----------------------------------------------------------------------------- kernel
def varmil_fwd_kernel(x_ref, w1_ref, b1_ref, w2_ref, b2_ref, a_ref, *, tanh_in_bf16):
    x = x_ref[...]                                          # (TK, L), native dtype
    # all-zero-row mask on the already-loaded tile (exact compare, XLU reduce)
    all_zero = jnp.all(x == 0, axis=1, keepdims=True)       # (TK, 1) bool

    # MXU operand in bf16 (no-op if x already streamed as bf16), f32 accumulation
    x_mxu = x if x.dtype == jnp.bfloat16 else x.astype(jnp.bfloat16)

    h = jnp.dot(x_mxu, w1_ref[...],                         # w1 pre-cast to bf16
                preferred_element_type=jnp.float32) + b1_ref[...]
    if tanh_in_bf16:                                        # v6e/v7x: bf16 EUP
        h = jnp.tanh(h.astype(jnp.bfloat16))
    else:                                                   # v5e: f32 EUP only
        h = jnp.tanh(h).astype(jnp.bfloat16)

    a = jnp.dot(h, w2_ref[...],                             # w2 pre-cast to bf16
                preferred_element_type=jnp.float32) + b2_ref[...]

    # masked_fill: rows of x that are entirely zero get -9e15 in every label column
    a_ref[...] = jnp.where(all_zero, jnp.float32(-9.0e15), a)


# ----------------------------------------------------------------------------- helpers
def _device_kind():
    try:
        return jax.devices()[0].device_kind.lower()
    except Exception:
        return ""


def _vmem_budget(kind):
    """Scoped-VMEM budget per TPU generation (bytes)."""
    if "7" in kind:                       # v7x: 64 MiB physical VMEM per TensorCore
        return 48 * 1024 * 1024
    if "v5" in kind or "v6" in kind:      # v5e/v5p/v6e: 128 MiB physical VMEM
        return 96 * 1024 * 1024
    return 32 * 1024 * 1024               # unknown / older: conservative default


def _use_bf16_tanh(kind):
    # v6e / v7x have bf16 VPU+EUP; v5e (and unknown chips) keep the f32 path.
    return ("v6" in kind) or ("7" in kind)


def _dimension_semantics(kind):
    if "7" in kind:                       # v7x: 2 TensorCores -> shard K tiles
        core_par = getattr(pltpu, "CORE_PARALLEL", None)
        if core_par is not None:
            return (core_par,)
    return ("parallel",)


def _pick_tk(K, L, n_labels, x_itemsize, w_bytes, vmem_budget):
    """Rows per tile so that 2x x-tile + 2x (lane-padded) output tile + resident
    weights fit in the per-generation VMEM budget with headroom."""
    lane = 128
    l_pad = ((L + lane - 1) // lane) * lane
    o_pad = ((n_labels + lane - 1) // lane) * lane
    x_row_bytes = l_pad * x_itemsize
    out_row_bytes = o_pad * 4                      # f32 output, lane-padded in VMEM
    slack = 2 * 1024 * 1024                        # compiler scratch / semaphores
    avail = vmem_budget - w_bytes - slack
    rows = avail // (2 * (x_row_bytes + out_row_bytes))   # depth-2 double buffer
    rows = int(max(8, rows))
    rows = (rows // 8) * 8                         # sublane granularity
    return K if K <= rows else rows


# ----------------------------------------------------------------------------- wrapper
def varmil_forward(x, w1, b1, w2, b2, *, tk=None):
    """x: (K, L) f32 or bf16.  Returns (A, x) matching the PyTorch forward()."""
    K, L = x.shape
    D = w1.shape[1]
    n_labels = w2.shape[1]

    # One-time wrapper-side casts (perf review item 1): bf16 MXU weights,
    # f32 biases for the f32 accumulator.
    w1b = w1 if w1.dtype == jnp.bfloat16 else w1.astype(jnp.bfloat16)
    w2b = w2 if w2.dtype == jnp.bfloat16 else w2.astype(jnp.bfloat16)
    b1f = b1.astype(jnp.float32)
    b2f = b2.astype(jnp.float32)

    kind = _device_kind()
    vmem_budget = _vmem_budget(kind)
    x_itemsize = x.dtype.itemsize
    w_bytes = (L * D) * 2 + (D * n_labels) * 2 + (D + n_labels) * 4

    if tk is None:
        tk = _pick_tk(K, L, n_labels, x_itemsize, w_bytes, vmem_budget)
    tk = min(int(tk), K)
    if tk < K:
        tk = max(8, (tk // 8) * 8)    # multiple of 8 unless it covers full K

    grid = (pl.cdiv(K, tk),)
    kernel = functools.partial(varmil_fwd_kernel, tanh_in_bf16=_use_bf16_tanh(kind))

    cost = pl.CostEstimate(
        flops=int(2 * K * L * D + 2 * K * D * n_labels),
        transcendentals=int(K * D),
        bytes_accessed=int(K * L * x_itemsize + K * n_labels * 4 + w_bytes),
    )

    def _call(dim_sem):
        return pl.pallas_call(
            kernel,
            out_shape=jax.ShapeDtypeStruct((K, n_labels), jnp.float32),
            grid=grid,
            in_specs=[
                pl.BlockSpec((tk, L), lambda i: (i, 0)),           # streamed x tiles
                pl.BlockSpec((L, D), lambda i: (0, 0)),            # resident bf16 w1
                pl.BlockSpec((1, D), lambda i: (0, 0)),            # resident f32 b1
                pl.BlockSpec((D, n_labels), lambda i: (0, 0)),     # resident bf16 w2
                pl.BlockSpec((1, n_labels), lambda i: (0, 0)),     # resident f32 b2
            ],
            out_specs=pl.BlockSpec((tk, n_labels), lambda i: (i, 0)),
            compiler_params=pltpu.CompilerParams(
                dimension_semantics=dim_sem,
                vmem_limit_bytes=int(vmem_budget),
            ),
            cost_estimate=cost,
        )(x, w1b, b1f, w2b, b2f)

    dim_sem = _dimension_semantics(kind)
    try:
        a = _call(dim_sem)
    except Exception:
        if dim_sem != ("parallel",):
            a = _call(("parallel",))   # fallback if CORE_PARALLEL lowering rejects
        else:
            raise
    return a, x


# ----------------------------------------------------------------------------- reference / init
def _ref_forward(x, w1, b1, w2, b2, *, tanh_in_bf16):
    """Pure-JAX reference mirroring the kernel numerics (bf16 MXU operands)."""
    xb = x.astype(jnp.bfloat16)
    h = jnp.dot(xb, w1.astype(jnp.bfloat16),
                preferred_element_type=jnp.float32) + b1.astype(jnp.float32)
    if tanh_in_bf16:
        h = jnp.tanh(h.astype(jnp.bfloat16))
    else:
        h = jnp.tanh(h).astype(jnp.bfloat16)
    a = jnp.dot(h, w2.astype(jnp.bfloat16),
                preferred_element_type=jnp.float32) + b2.astype(jnp.float32)
    mask = jnp.all(x == 0, axis=1, keepdims=True)
    return jnp.where(mask, jnp.float32(-9.0e15), a)


def init_params(key, L, D, n_labels):
    """PyTorch-style Linear init (uniform +/- 1/sqrt(fan_in)); weights stored
    transposed w.r.t. torch so the kernel does plain x @ W."""
    k1, k2, k3, k4 = jax.random.split(key, 4)
    bound1 = 1.0 / jnp.sqrt(jnp.float32(L))
    bound2 = 1.0 / jnp.sqrt(jnp.float32(D))
    w1 = jax.random.uniform(k1, (L, D), jnp.float32, -bound1, bound1)
    b1 = jax.random.uniform(k2, (1, D), jnp.float32, -bound1, bound1)
    w2 = jax.random.uniform(k3, (D, n_labels), jnp.float32, -bound2, bound2)
    b2 = jax.random.uniform(k4, (1, n_labels), jnp.float32, -bound2, bound2)
    return w1, b1, w2, b2


# ----------------------------------------------------------------------------- demo
if __name__ == "__main__":
    # Small shapes consistent with the module: K patches, L features per patch.
    # tk=64 forces a 4-step grid so the streamed/pipelined path is exercised.
    K, L, D, n_labels = 256, 128, 32, 4
    TK = 64

    key = jax.random.PRNGKey(0)
    kx, kp = jax.random.split(key)
    x = jax.random.normal(kx, (K, L), jnp.float32)
    # Make a few patches all-zero (in different tiles) to exercise masked_fill.
    x = x.at[3, :].set(0.0)
    x = x.at[100, :].set(0.0)
    x = x.at[250, :].set(0.0)

    w1, b1, w2, b2 = init_params(kp, L, D, n_labels)
    tanh_bf16 = _use_bf16_tanh(_device_kind())

    # ---- f32-input path (exact f32 zero-row mask semantics) ----
    A, x_out = varmil_forward(x, w1, b1, w2, b2, tk=TK)
    A = jax.block_until_ready(A)
    x_out = jax.block_until_ready(x_out)

    ref = _ref_forward(x, w1, b1, w2, b2, tanh_in_bf16=tanh_bf16)
    mask = jnp.all(x == 0.0, axis=1, keepdims=True)
    ref_f32 = jnp.where(mask, jnp.float32(-9.0e15),
                        jnp.tanh(x @ w1 + b1) @ w2 + b2)

    assert A.shape == (K, n_labels)
    assert jnp.allclose(A, ref, atol=1e-2, rtol=1e-2)          # matched numerics
    assert jnp.allclose(A, ref_f32, atol=6e-2, rtol=6e-2)      # full-f32 reference
    assert bool(jnp.all(A[3] == -9.0e15))
    assert bool(jnp.all(A[100] == -9.0e15))
    assert bool(jnp.all(A[250] == -9.0e15))
    assert jnp.array_equal(x_out, x)

    # ---- bf16-streamed path (bandwidth-optimal: caller supplies bf16 features) ----
    xb = x.astype(jnp.bfloat16)
    A_bf, xb_out = varmil_forward(xb, w1, b1, w2, b2, tk=TK)
    A_bf = jax.block_until_ready(A_bf)
    ref_bf = _ref_forward(xb, w1, b1, w2, b2, tanh_in_bf16=tanh_bf16)

    assert A_bf.shape == (K, n_labels)
    assert jnp.allclose(A_bf, ref_bf, atol=1e-2, rtol=1e-2)
    assert bool(jnp.all(A_bf[3] == -9.0e15))
    assert bool(jnp.all(A_bf[250] == -9.0e15))
    assert jnp.array_equal(xb_out, xb)

    # TODO(synk): compute_agg (weighted mean/variance aggregation) is a separate
    # method, not part of forward(); it is not implemented here.
    print("KERNEL_OK")
</pallas_src>

<mosaic_0001>
module attributes {stable_mosaic.version = 11 : i64} {
  func.func @varmil_fwd_kernel(%arg0: i32, %arg1: memref<64x128xf32, #tpu.memory_space<vmem>>, %arg2: memref<128x32xbf16, #tpu.memory_space<vmem>>, %arg3: memref<1x32xf32, #tpu.memory_space<vmem>>, %arg4: memref<32x4xbf16, #tpu.memory_space<vmem>>, %arg5: memref<1x4xf32, #tpu.memory_space<vmem>>, %arg6: memref<64x4xf32, #tpu.memory_space<vmem>>) attributes {dimension_semantics = [#tpu.dimension_semantics<parallel>], iteration_bounds = array<i64: 4>, scalar_prefetch = 0 : i64, scratch_operands = 0 : i64, tpu.core_type = #tpu.core_type<tc>, window_params = [{transform_indices = @transform_0, window_bounds = array<i64: 64, 128>}, {pipeline_mode = #tpu.pipeline_mode<synchronous>, transform_indices = @transform_1, window_bounds = array<i64: 128, 32>}, {pipeline_mode = #tpu.pipeline_mode<synchronous>, transform_indices = @transform_2, window_bounds = array<i64: 1, 32>}, {pipeline_mode = #tpu.pipeline_mode<synchronous>, transform_indices = @transform_3, window_bounds = array<i64: 32, 4>}, {pipeline_mode = #tpu.pipeline_mode<synchronous>, transform_indices = @transform_4, window_bounds = array<i64: 1, 4>}, {transform_indices = @transform_5, window_bounds = array<i64: 64, 4>}]} {
    %c0 = arith.constant 0 : index
    %c0_0 = arith.constant 0 : index
    %0 = vector.load %arg1[%c0, %c0_0] : memref<64x128xf32, #tpu.memory_space<vmem>>, vector<64x128xf32>
    %cst = arith.constant 0.000000e+00 : f32
    %1 = vector.broadcast %cst : f32 to vector<64x128xf32>
    %2 = arith.cmpf oeq, %0, %1 : vector<64x128xf32>
    %cst_1 = arith.constant 1.000000e+00 : f32
    %cst_2 = arith.constant 0.000000e+00 : f32
    %3 = vector.broadcast %cst_1 : f32 to vector<64x128xf32>
    %4 = vector.broadcast %cst_2 : f32 to vector<64x128xf32>
    %5 = arith.select %2, %3, %4 : vector<64x128xi1>, vector<64x128xf32>
    %cst_3 = arith.constant dense<0x7F800000> : vector<64xf32>
    %6 = vector.multi_reduction <minimumf>, %5, %cst_3 [1] : vector<64x128xf32> to vector<64xf32>
    %cst_4 = arith.constant 0.000000e+00 : f32
    %7 = vector.broadcast %cst_4 : f32 to vector<64xf32>
    %8 = arith.cmpf ogt, %6, %7 : vector<64xf32>
    %9 = vector.shape_cast %8 : vector<64xi1> to vector<64x1xi1>
    %10 = arith.truncf %0 : vector<64x128xf32> to vector<64x128xbf16>
    %c0_5 = arith.constant 0 : index
    %c0_6 = arith.constant 0 : index
    %11 = vector.load %arg2[%c0_5, %c0_6] : memref<128x32xbf16, #tpu.memory_space<vmem>>, vector<128x32xbf16>
    %cst_7 = arith.constant dense<0.000000e+00> : vector<64x32xf32>
    %12 = tpu.matmul %10, %11, %cst_7 {dimension_numbers = #tpu.dot_dimension_numbers<[1], [0], [0], [1], [0, 0, 1, 1], [], []>} : vector<64x128xbf16>, vector<128x32xbf16>, vector<64x32xf32> -> vector<64x32xf32>
    %c0_8 = arith.constant 0 : index
    %c0_9 = arith.constant 0 : index
    %13 = vector.load %arg3[%c0_8, %c0_9] : memref<1x32xf32, #tpu.memory_space<vmem>>, vector<1x32xf32>
    %14 = vector.broadcast %13 : vector<1x32xf32> to vector<64x32xf32>
    %15 = arith.addf %12, %14 : vector<64x32xf32>
    %16 = math.tanh %15 : vector<64x32xf32>
    %17 = arith.truncf %16 : vector<64x32xf32> to vector<64x32xbf16>
    %c0_10 = arith.constant 0 : index
    %c0_11 = arith.constant 0 : index
    %18 = vector.load %arg4[%c0_10, %c0_11] : memref<32x4xbf16, #tpu.memory_space<vmem>>, vector<32x4xbf16>
    %cst_12 = arith.constant dense<0.000000e+00> : vector<64x4xf32>
    %19 = tpu.matmul %17, %18, %cst_12 {dimension_numbers = #tpu.dot_dimension_numbers<[1], [0], [0], [1], [0, 0, 1, 1], [], []>} : vector<64x32xbf16>, vector<32x4xbf16>, vector<64x4xf32> -> vector<64x4xf32>
    %c0_13 = arith.constant 0 : index
    %c0_14 = arith.constant 0 : index
    %20 = vector.load %arg5[%c0_13, %c0_14] : memref<1x4xf32, #tpu.memory_space<vmem>>, vector<1x4xf32>
    %21 = vector.broadcast %20 : vector<1x4xf32> to vector<64x4xf32>
    %22 = arith.addf %19, %21 : vector<64x4xf32>
    %cst_15 = arith.constant -9.000000e+15 : f32
    %23 = vector.shape_cast %9 : vector<64x1xi1> to vector<64x1xi1>
    %24 = vector.broadcast %23 : vector<64x1xi1> to vector<64x4xi1>
    %25 = vector.broadcast %cst_15 : f32 to vector<64x4xf32>
    %26 = arith.select %24, %25, %22 : vector<64x4xi1>, vector<64x4xf32>
    %c0_16 = arith.constant 0 : index
    %c0_17 = arith.constant 0 : index
    %27 = vector.load %arg6[%c0_16, %c0_17] : memref<64x4xf32, #tpu.memory_space<vmem>>, vector<64x4xf32>
    tpu.vector_store %arg6[%c0_16, %c0_17], %26 {strides = array<i32>} : memref<64x4xf32, #tpu.memory_space<vmem>>, vector<64x4xf32>,
    return
  }
  func.func @transform_0(%arg0: i32) -> (i32, i32) {
    %c0_i32 = arith.constant 0 : i32
    %c0_i32_0 = arith.constant 0 : i32
    return %arg0, %c0_i32 : i32, i32
  }
  func.func @transform_1(%arg0: i32) -> (i32, i32) {
    %c0_i32 = arith.constant 0 : i32
    %c0_i32_0 = arith.constant 0 : i32
    %c0_i32_1 = arith.constant 0 : i32
    return %c0_i32, %c0_i32_0 : i32, i32
  }
  func.func @transform_2(%arg0: i32) -> (i32, i32) {
    %c0_i32 = arith.constant 0 : i32
    %c0_i32_0 = arith.constant 0 : i32
    %c0_i32_1 = arith.constant 0 : i32
    return %c0_i32, %c0_i32_0 : i32, i32
  }
  func.func @transform_3(%arg0: i32) -> (i32, i32) {
    %c0_i32 = arith.constant 0 : i32
    %c0_i32_0 = arith.constant 0 : i32
    %c0_i32_1 = arith.constant 0 : i32
    return %c0_i32, %c0_i32_0 : i32, i32
  }
  func.func @transform_4(%arg0: i32) -> (i32, i32) {
    %c0_i32 = arith.constant 0 : i32
    %c0_i32_0 = arith.constant 0 : i32
    %c0_i32_1 = arith.constant 0 : i32
    return %c0_i32, %c0_i32_0 : i32, i32
  }
  func.func @transform_5(%arg0: i32) -> (i32, i32) {
    %c0_i32 = arith.constant 0 : i32
    %c0_i32_0 = arith.constant 0 : i32
    return %arg0, %c0_i32 : i32, i32
  }
}

</mosaic_0001>

<llo_original>
// kernel: tpu_custom_call.1
$region0: #{tpu_custom_call.1}
  #allocation0 [shape = 'u32[]', space=smem, size = 0x4, offset = 0x4, fixed_abs, tag = 'smem constant byte address 0x4 - core index']
  #allocation1 [shape = 'u32[72,128]{1,0:T(1,128)}', space=vmem, size = 0x9000, scoped, tag = 'internal scratch']
  %s0 = inlined_call_operand.hbm [shape: f32[256,128], index: 0, kind: input, shape index: {}]
  %s1 = inlined_call_operand.vmem [shape: bf16[128,32], index: 1, kind: input, shape index: {}]
  %s2 = inlined_call_operand.vmem [shape: f32[1,32], index: 2, kind: input, shape index: {}]
  %s3 = inlined_call_operand.vmem [shape: bf16[32,4], index: 3, kind: input, shape index: {}]
  %s4 = inlined_call_operand.vmem [shape: f32[1,4], index: 4, kind: input, shape index: {}]
  %s5 = inlined_call_operand.vmem [shape: f32[256,4], index: 5, kind: output, shape index: {}]
  %s6 = sld [smem:[#allocation0]]
  $region57: #{tpu_custom_call.1} parent=0
    _
  %s8 = ssub.s32 1, %s6
  %s9 = scalar_select 0, %s8, %s6
  $region1: #{tpu_custom_call.1} parent=0
    #allocation2 [shape = 'u8[65536]{0}', space=vmem, size = 0x10000, scoped, tag = 'input window, operand 0']
    #allocation3 [shape = 's32[2]{0}', space=sflag, size = 0x8, scoped, tag = 'scoped memory for tpu_custom_call.1']
    %10 = vsyncpa [#allocation3], 0
    %s11 = scalar_lea.sflag [#allocation3], 1
    %12 = vsyncpa %s11, 0
    loop: start=0, step=1, limit=6
    $region2: #{tpu_custom_call.1} parent=1 // loop_pre_header
      _
    $region3: #{tpu_custom_call.1} parent=1 // loop_header
      %s14 = sphi 0, %s18
      %p15 = scmp.ge.s32.totalorder %s14, 6
      %s24 = sphi 0, %s26
      %s27 = sphi 0, %s24
      %s28 = sphi 0, %s27
      %s44 = sphi 0, %s28
      %s48 = sphi 0, %s48
      %s50 = sphi 0, %s48
      %s51 = sphi 0, %s50
      %s65 = sphi 0, %s51
      %s69 = sphi 0, %s69
      %s71 = sphi 0, %s69
      %s72 = sphi 0, %s71
      %s86 = sphi 0, %s72
      %s90 = sphi 0, %s90
      %s92 = sphi 0, %s90
      %s93 = sphi 0, %s92
      %s107 = sphi 0, %s93
      %s111 = sphi 0, %s111
      %s113 = sphi 0, %s111
      %s114 = sphi 0, %s113
      %s128 = sphi 0, %s114
      %s134 = sphi 0, %s136
      %s137 = sphi 0, %s134
      %s138 = sphi 0, %s137
      %s154 = sphi 0, %s138
    $region4: #{tpu_custom_call.1} parent=1 // loop_header_branch
      %17 = sbr.rel (%p15) target = $region8
    $region5: #{tpu_custom_call.1} parent=1 // loop_body
      %s19 = ssub.s32 %s14, 1
      %s20 = ssub.s32 %s14, 2
      %s21 = sadd.s32 %s14, 1
      %s22 = ssub.s32 %s14, %s21
      %p23 = scmp.eq.s32.totalorder %s22, 0
      %s25 = sadd.s32 %s24, 1
      %s26 = scalar_select %p23, %s24, %s25
      %p29 = pneg %p23
      %p30 = scmp.eq.s32.totalorder %s14, 3
      %p31 = por %p29, %p30
      %p32 = scmp.ne.s32.totalorder %s24, %s27
      %p33 = scmp.eq.s32.totalorder %s14, 0
      %p34 = por %p32, %p33
      %p35 = scmp.ne.s32.totalorder %s24, %s27
      %p36 = scmp.eq.s32.totalorder %s19, 3
      %p37 = por %p35, %p36
      %p38 = scmp.ne.s32.totalorder %s27, %s28
      %p39 = scmp.eq.s32.totalorder %s19, 0
      %p40 = por %p38, %p39
      %p41 = scmp.ne.s32.totalorder %s27, %s28
      %p42 = scmp.eq.s32.totalorder %s20, 3
      %p43 = por %p41, %p42
      %p45 = scmp.ne.s32.totalorder %s28, %s44
      %p46 = scmp.eq.s32.totalorder %s20, 0
      %p47 = por %p45, %p46
      %s49 = sadd.s32 %s48, 1
      %p52 = scmp.eq.s32.totalorder %s14, 3
      %p53 = scmp.ne.s32.totalorder %s48, %s50
      %p54 = scmp.eq.s32.totalorder %s14, 0
      %p55 = por %p53, %p54
      %p56 = scmp.ne.s32.totalorder %s48, %s50
      %p57 = scmp.eq.s32.totalorder %s19, 3
      %p58 = por %p56, %p57
      %p59 = scmp.ne.s32.totalorder %s50, %s51
      %p60 = scmp.eq.s32.totalorder %s19, 0
      %p61 = por %p59, %p60
      %p62 = scmp.ne.s32.totalorder %s50, %s51
      %p63 = scmp.eq.s32.totalorder %s20, 3
      %p64 = por %p62, %p63
      %p66 = scmp.ne.s32.totalorder %s51, %s65
      %p67 = scmp.eq.s32.totalorder %s20, 0
      %p68 = por %p66, %p67
      %s70 = sadd.s32 %s69, 1
      %p73 = scmp.eq.s32.totalorder %s14, 3
      %p74 = scmp.ne.s32.totalorder %s69, %s71
      %p75 = scmp.eq.s32.totalorder %s14, 0
      %p76 = por %p74, %p75
      %p77 = scmp.ne.s32.totalorder %s69, %s71
      %p78 = scmp.eq.s32.totalorder %s19, 3
      %p79 = por %p77, %p78
      %p80 = scmp.ne.s32.totalorder %s71, %s72
      %p81 = scmp.eq.s32.totalorder %s19, 0
      %p82 = por %p80, %p81
      %p83 = scmp.ne.s32.totalorder %s71, %s72
      %p84 = scmp.eq.s32.totalorder %s20, 3
      %p85 = por %p83, %p84
      %p87 = scmp.ne.s32.totalorder %s72, %s86
      %p88 = scmp.eq.s32.totalorder %s20, 0
      %p89 = por %p87, %p88
      %s91 = sadd.s32 %s90, 1
      %p94 = scmp.eq.s32.totalorder %s14, 3
      %p95 = scmp.ne.s32.totalorder %s90, %s92
      %p96 = scmp.eq.s32.totalorder %s14, 0
      %p97 = por %p95, %p96
      %p98 = scmp.ne.s32.totalorder %s90, %s92
      %p99 = scmp.eq.s32.totalorder %s19, 3
      %p100 = por %p98, %p99
      %p101 = scmp.ne.s32.totalorder %s92, %s93
      %p102 = scmp.eq.s32.totalorder %s19, 0
      %p103 = por %p101, %p102
      %p104 = scmp.ne.s32.totalorder %s92, %s93
      %p105 = scmp.eq.s32.totalorder %s20, 3
      %p106 = por %p104, %p105
      %p108 = scmp.ne.s32.totalorder %s93, %s107
      %p109 = scmp.eq.s32.totalorder %s20, 0
      %p110 = por %p108, %p109
      %s112 = sadd.s32 %s111, 1
      %p115 = scmp.eq.s32.totalorder %s14, 3
      %p116 = scmp.ne.s32.totalorder %s111, %s113
      %p117 = scmp.eq.s32.totalorder %s14, 0
      %p118 = por %p116, %p117
      %p119 = scmp.ne.s32.totalorder %s111, %s113
      %p120 = scmp.eq.s32.totalorder %s19, 3
      %p121 = por %p119, %p120
      %p122 = scmp.ne.s32.totalorder %s113, %s114
      %p123 = scmp.eq.s32.totalorder %s19, 0
      %p124 = por %p122, %p123
      %p125 = scmp.ne.s32.totalorder %s113, %s114
      %p126 = scmp.eq.s32.totalorder %s20, 3
      %p127 = por %p125, %p126
      %p129 = scmp.ne.s32.totalorder %s114, %s128
      %p130 = scmp.eq.s32.totalorder %s20, 0
      %p131 = por %p129, %p130
      %s132 = ssub.s32 %s14, %s21
      %p133 = scmp.eq.s32.totalorder %s132, 0
      %s135 = sadd.s32 %s134, 1
      %s136 = scalar_select %p133, %s134, %s135
      %p139 = pneg %p133
      %p140 = scmp.eq.s32.totalorder %s14, 3
      %p141 = por %p139, %p140
      %p142 = scmp.ne.s32.totalorder %s134, %s137
      %p143 = scmp.eq.s32.totalorder %s14, 0
      %p144 = por %p142, %p143
      %p145 = scmp.ne.s32.totalorder %s134, %s137
      %p146 = scmp.eq.s32.totalorder %s19, 3
      %p147 = por %p145, %p146
      %p148 = scmp.ne.s32.totalorder %s137, %s138
      %p149 = scmp.eq.s32.totalorder %s19, 0
      %p150 = por %p148, %p149
      %p151 = scmp.ne.s32.totalorder %s137, %s138
      %p152 = scmp.eq.s32.totalorder %s20, 3
      %p153 = por %p151, %p152
      %p155 = scmp.ne.s32.totalorder %s138, %s154
      %p156 = scmp.eq.s32.totalorder %s20, 0
      %p157 = por %p155, %p156
      %p158 = scmp.le.s32.totalorder 1, %s14
      %p159 = scmp.lt.s32.totalorder %s14, 5
      %p160 = pnand %p158, %p159
      %p161 = pneg %p160
      // Predicated region
      $region9: #{tpu_custom_call.1} parent=5 // pred_check
        _
      $region10: #{tpu_custom_call.1} parent=5 // pred_check_branch
        %163 = sbr.rel (%p160) target = $region12
      $region11: #{tpu_custom_call.1} parent=5 // pred_region
        %s164 = ssub.s32 %s14, 1
        // Predicated region
        $region13: #{tpu_custom_call.1} parent=11 // pred_check
          %p165 = pneg %p61
        $region14: #{tpu_custom_call.1} parent=11 // pred_check_branch
          %167 = sbr.rel (%p165) target = $region16
        $region15: #{tpu_custom_call.1} parent=11 // pred_region
          _
        $region16: #{tpu_custom_call.1} parent=11 // pred_fallthru
          _
        // Predicated region
        $region17: #{tpu_custom_call.1} parent=11 // pred_check
          %p168 = pneg %p82
        $region18: #{tpu_custom_call.1} parent=11 // pred_check_branch
          %170 = sbr.rel (%p168) target = $region20
        $region19: #{tpu_custom_call.1} parent=11 // pred_region
          _
        $region20: #{tpu_custom_call.1} parent=11 // pred_fallthru
          _
        // Predicated region
        $region21: #{tpu_custom_call.1} parent=11 // pred_check
          %p171 = pneg %p103
        $region22: #{tpu_custom_call.1} parent=11 // pred_check_branch
          %173 = sbr.rel (%p171) target = $region24
        $region23: #{tpu_custom_call.1} parent=11 // pred_region
          _
        $region24: #{tpu_custom_call.1} parent=11 // pred_fallthru
          _
        // Predicated region
        $region25: #{tpu_custom_call.1} parent=11 // pred_check
          %p174 = pneg %p124
        $region26: #{tpu_custom_call.1} parent=11 // pred_check_branch
          %176 = sbr.rel (%p174) target = $region28
        $region27: #{tpu_custom_call.1} parent=11 // pred_region
          _
        $region28: #{tpu_custom_call.1} parent=11 // pred_fallthru
          _
      $region12: #{tpu_custom_call.1} parent=5 // pred_fallthru
        _
      %p177 = scmp.lt.s32.totalorder %s14, 4
      // Predicated region
      $region29: #{tpu_custom_call.1} parent=5 // pred_check
        %p178 = pneg %p177
      $region30: #{tpu_custom_call.1} parent=5 // pred_check_branch
        %180 = sbr.rel (%p178) target = $region32
      $region31: #{tpu_custom_call.1} parent=5 // pred_region
        // Predicated region
        $region33: #{tpu_custom_call.1} parent=31 // pred_check
          %p181 = pneg %p34
        $region34: #{tpu_custom_call.1} parent=31 // pred_check_branch
          %183 = sbr.rel (%p181) target = $region36
        $region35: #{tpu_custom_call.1} parent=31 // pred_region
          %s184 = sand.u32 %s24, 1
          %s185 = scalar_lea.sflag [#allocation3], %s184
          %s186 = sand.u32 %s24, 1
          %s187 = smul.addr %s186, 64
          %s188 = scalar_lea.vmem [#allocation2], %s187
          %s189 = smul.u32 8, %s14
          %191 = vsyncadd %s185, 0
          %s192 = smul.addr %s189, 8
          %s193 = scalar_lea.hbm %s0, %s192
          %s194 = sshll.u32 %s193, 4
          %s195 = int_to_ptr.hbm [resolvable:$true] %s194
          %s196 = sshll.u32 %s188, 4
          %s197 = int_to_ptr.vmem [resolvable:$true] %s196
          %202 = dma.hbm_to_vmem [thread:$0]  %s195, 1024, %s197, %s185, 128, 128, 8
        $region36: #{tpu_custom_call.1} parent=31 // pred_fallthru
          _
      $region32: #{tpu_custom_call.1} parent=5 // pred_fallthru
        _
      %p203 = scmp.le.s32.totalorder 1, %s14
      %p204 = scmp.lt.s32.totalorder %s14, 5
      %p205 = pnand %p203, %p204
      %p206 = pneg %p205
      // Predicated region
      $region37: #{tpu_custom_call.1} parent=5 // pred_check
        _
      $region38: #{tpu_custom_call.1} parent=5 // pred_check_branch
        %208 = sbr.rel (%p205) target = $region40
      $region39: #{tpu_custom_call.1} parent=5 // pred_region
        %s209 = ssub.s32 %s14, 1
        %s210 = sand.u32 %s27, 1
        %s211 = scalar_lea.sflag [#allocation3], %s210
        %s212 = sand.u32 %s27, 1
        %s213 = smul.addr %s212, 64
        %s214 = scalar_lea.vmem [#allocation2], %s213
        // Predicated region
        $region41: #{tpu_custom_call.1} parent=39 // pred_check
          %p215 = pneg %p40
        $region42: #{tpu_custom_call.1} parent=39 // pred_check_branch
          %217 = sbr.rel (%p215) target = $region44
        $region43: #{tpu_custom_call.1} parent=39 // pred_region
          %219 = dma.done %s211, 1024
        $region44: #{tpu_custom_call.1} parent=39 // pred_fallthru
          _
        %s220 = sand.u32 %s27, 1
        %s221 = scalar_lea.sflag [#allocation3], %s220
        %s222 = sand.u32 %s27, 1
        %s223 = smul.addr %s222, 64
        %s224 = scalar_lea.vmem [#allocation2], %s223
        %p225 = pneg %p40
        %p226 = pneg %p37
        %p227 = pneg %p61
        %p228 = pneg %p58
        %p229 = pneg %p82
        %p230 = pneg %p79
        %p231 = pneg %p103
        %p232 = pneg %p100
        %p233 = pneg %p124
        %p234 = pneg %p121
        %p235 = pneg %p150
        %p236 = pneg %p147
        %s237 = smul.u32 8, %s19
        %p238 = scmp.lt.s32.totalorder %s237, 31
        %s239 = scalar_select %p238, %s237, 31
        %s240 = smul.addr %s239, 8
        %s241 = scalar_lea.vmem %s5, %s240
        %s242 = smul.u32 8, %s19
        %s243 = smul.u32 8, %s19
        %p244 = scmp.lt.s32.totalorder %s243, 31
        %s245 = scalar_select %p244, %s243, 31
        %s246 = smul.addr %s245, 8
        %s247 = scalar_lea.vmem %s5, %s246
        %s248 = smul.u32 8, %s19
        %v250 = vld [vmem:[%s214] sm:$0xff]
        %v251 = vld [vmem:[%s214 + $0x8] sm:$0xff]
        %v252 = vld [vmem:[%s214 + $0x10] sm:$0xff]
        %v253 = vld [vmem:[%s214 + $0x18] sm:$0xff]
        %v254 = vld [vmem:[%s214 + $0x20] sm:$0xff]
        %v255 = vld [vmem:[%s214 + $0x28] sm:$0xff]
        %v256 = vld [vmem:[%s214 + $0x30] sm:$0xff]
        %v257 = vld [vmem:[%s214 + $0x38] sm:$0xff]
        %vm258 = vcmp.eq.f32.partialorder %v250, 0.0
        %vm259 = vcmp.eq.f32.partialorder %v251, 0.0
        %vm260 = vcmp.eq.f32.partialorder %v252, 0.0
        %vm261 = vcmp.eq.f32.partialorder %v253, 0.0
        %vm262 = vcmp.eq.f32.partialorder %v254, 0.0
        %vm263 = vcmp.eq.f32.partialorder %v255, 0.0
        %vm264 = vcmp.eq.f32.partialorder %v256, 0.0
        %vm265 = vcmp.eq.f32.partialorder %v257, 0.0
        %v266 = vsel %vm258, 1.0, 0.0
        %v267 = vsel %vm259, 1.0, 0.0
        %v268 = vsel %vm260, 1.0, 0.0
        %v269 = vsel %vm261, 1.0, 0.0
        %v270 = vsel %vm262, 1.0, 0.0
        %v271 = vsel %vm263, 1.0, 0.0
        %v272 = vsel %vm264, 1.0, 0.0
        %v273 = vsel %vm265, 1.0, 0.0
        %274 = vmin.xlane.f32.xlu0 %v266
        %v275 = vpop.xlane.xlu0 %274
        %276 = vmin.xlane.f32.xlu0 %v267
        %v277 = vpop.xlane.xlu0 %276
        %278 = vmin.xlane.f32.xlu0 %v268
        %v279 = vpop.xlane.xlu0 %278
        %280 = vmin.xlane.f32.xlu0 %v269
        %v281 = vpop.xlane.xlu0 %280
        %282 = vmin.xlane.f32.xlu0 %v270
        %v283 = vpop.xlane.xlu0 %282
        %284 = vmin.xlane.f32.xlu0 %v271
        %v285 = vpop.xlane.xlu0 %284
        %286 = vmin.xlane.f32.xlu0 %v272
        %v287 = vpop.xlane.xlu0 %286
        %288 = vmin.xlane.f32.xlu0 %v273
        %v289 = vpop.xlane.xlu0 %288
        %vm290 = vcmp.gt.f32.partialorder %v275, 0.0
        %vm291 = vcmp.gt.f32.partialorder %v277, 0.0
        %vm292 = vcmp.gt.f32.partialorder %v279, 0.0
        %vm293 = vcmp.gt.f32.partialorder %v281, 0.0
        %vm294 = vcmp.gt.f32.partialorder %v283, 0.0
        %vm295 = vcmp.gt.f32.partialorder %v285, 0.0
        %vm296 = vcmp.gt.f32.partialorder %v287, 0.0
        %vm297 = vcmp.gt.f32.partialorder %v289, 0.0
        %v298 = vpack.c.bf16 %v251, %v250
        %v299 = vpack.c.bf16 %v253, %v252
        %v300 = vpack.c.bf16 %v255, %v254
        %v301 = vpack.c.bf16 %v257, %v256
        %v302 = vld [vmem:[%s1] sm:$0xf]
        %v303 = vld [vmem:[%s1 + $0x4] sm:$0xf]
        %v304 = vld [vmem:[%s1 + $0x8] sm:$0xf]
        %v305 = vld [vmem:[%s1 + $0xc] sm:$0xf]
        %v306 = vld [vmem:[%s1 + $0x10] sm:$0xf]
        %v307 = vld [vmem:[%s1 + $0x14] sm:$0xf]
        %v308 = vld [vmem:[%s1 + $0x18] sm:$0xf]
        %v309 = vld [vmem:[%s1 + $0x1c] sm:$0xf]
        %v310 = vld [vmem:[%s1 + $0x20] sm:$0xf]
        %v311 = vld [vmem:[%s1 + $0x24] sm:$0xf]
        %v312 = vld [vmem:[%s1 + $0x28] sm:$0xf]
        %v313 = vld [vmem:[%s1 + $0x2c] sm:$0xf]
        %v314 = vld [vmem:[%s1 + $0x30] sm:$0xf]
        %v315 = vld [vmem:[%s1 + $0x34] sm:$0xf]
        %v316 = vld [vmem:[%s1 + $0x38] sm:$0xf]
        %v317 = vld [vmem:[%s1 + $0x3c] sm:$0xf]
        %v318 = vld [vmem:[%s2] sm:$0x1]
        %v320 = vperm.slane %v318, 0
        %v338 = vunpack.c.l.b16 %v302
        %v339 = vunpack.c.l.b16 %v303
        %v340 = vunpack.c.l.b16 %v304
        %v341 = vunpack.c.l.b16 %v305
        %v342 = vunpack.c.l.b16 %v306
        %v343 = vunpack.c.l.b16 %v307
        %v344 = vunpack.c.l.b16 %v308
        %v345 = vunpack.c.l.b16 %v309
        %v346 = vunpack.c.l.b16 %v310
        %v347 = vunpack.c.l.b16 %v311
        %v348 = vunpack.c.l.b16 %v312
        %v349 = vunpack.c.l.b16 %v313
        %v350 = vunpack.c.l.b16 %v314
        %v351 = vunpack.c.l.b16 %v315
        %v352 = vunpack.c.l.b16 %v316
        %v353 = vunpack.c.l.b16 %v317
        %v354 = vpack.c.b16 %v339, %v338
        %v355 = vpack.c.b16 %v341, %v340
        %v356 = vpack.c.b16 %v343, %v342
        %v357 = vpack.c.b16 %v345, %v344
        %v358 = vpack.c.b16 %v347, %v346
        %v359 = vpack.c.b16 %v349, %v348
        %v360 = vpack.c.b16 %v351, %v350
        %v361 = vpack.c.b16 %v353, %v352
        %370 = vmatpush.bf16.msra.mxu0 %v361
        %371 = vmatpush.bf16.msra.mxu0 %v360
        %372 = vmatpush.bf16.msra.mxu0 %v359
        %373 = vmatpush.bf16.msra.mxu0 %v358
        %374 = vmatpush.bf16.msra.mxu0 %v357
        %375 = vmatpush.bf16.msra.mxu0 %v356
        %376 = vmatpush.bf16.msra.mxu0 %v355
        %377 = vmatpush.bf16.msra.mxu0 %v354
        %378 = vmatmul.bf16.gmra.mxu0 %v298
        %v379 = vpop.f32.mrf.mxu0
        %v380 = vadd.f32 %v320, %v379
        %v381 = vpop.f32.mrf.mxu0
        %v382 = vadd.f32 %v320, %v381
        %383 = vmatmul.bf16.gmra.mxu0 %v299
        %v384 = vpop.f32.mrf.mxu0
        %v385 = vadd.f32 %v320, %v384
        %v386 = vpop.f32.mrf.mxu0
        %v387 = vadd.f32 %v320, %v386
        %388 = vmatmul.bf16.gmra.mxu0 %v300
        %v389 = vpop.f32.mrf.mxu0
        %v390 = vadd.f32 %v320, %v389
        %v391 = vpop.f32.mrf.mxu0
        %v392 = vadd.f32 %v320, %v391
        %393 = vmatmul.bf16.gmra.mxu0 %v301
        %v394 = vpop.f32.mrf.mxu0
        %v395 = vadd.f32 %v320, %v394
        %v396 = vpop.f32.mrf.mxu0
        %v397 = vadd.f32 %v320, %v396
        %398 = vdwg.mxu0
        %v399 = vtanh.pop %v380
        %v400 = vtanh.pop %v382
        %v401 = vtanh.pop %v385
        %v402 = vtanh.pop %v387
        %v403 = vtanh.pop %v390
        %v404 = vtanh.pop %v392
        %v405 = vtanh.pop %v395
        %v406 = vtanh.pop %v397
        %v407 = vpack.c.bf16 %v400, %v399
        %v408 = vpack.c.bf16 %v402, %v401
        %v409 = vpack.c.bf16 %v404, %v403
        %v410 = vpack.c.bf16 %v406, %v405
        %v411 = vld [vmem:[%s3] sm:$0xf]
        %v412 = vld [vmem:[%s3 + $0x4] sm:$0xf]
        %v413 = vld [vmem:[%s3 + $0x8] sm:$0xf]
        %v414 = vld [vmem:[%s3 + $0xc] sm:$0xf]
        %v415 = vld [vmem:[%s4] sm:$0x1]
        %v417 = vperm.slane %v415, 0
        %v423 = vunpack.c.l.b16 %v411
        %v424 = vunpack.c.l.b16 %v412
        %v425 = vunpack.c.l.b16 %v413
        %v426 = vunpack.c.l.b16 %v414
        %v427 = vpack.c.b16 %v424, %v423
        %v428 = vpack.c.b16 %v426, %v425
        %vm431 = vcmask 261120
        %v433 = vsel %vm431, %v407, 0
        %v436 = vsel %vm431, %v408, 0
        %v439 = vsel %vm431, %v409, 0
        %v442 = vsel %vm431, %v410, 0
        %444 = vmatpush.bf16.msra.mxu0 0
        %445 = vmatpush.bf16.msra.mxu0 0
        %446 = vmatpush.bf16.msra.mxu0 0
        %447 = vmatpush.bf16.msra.mxu0 0
        %448 = vmatpush.bf16.msra.mxu0 0
        %449 = vmatpush.bf16.msra.mxu0 0
        %450 = vmatpush.bf16.msra.mxu0 %v428
        %451 = vmatpush.bf16.msra.mxu0 %v427
        %452 = vmatmul.bf16.gmra.mxu0 %v433
        %v453 = vpop.f32.mrf.mxu0
        %v454 = vadd.f32 %v417, %v453
        %v455 = vpop.f32.mrf.mxu0
        %v456 = vadd.f32 %v417, %v455
        %457 = vmatmul.bf16.gmra.mxu0 %v436
        %v458 = vpop.f32.mrf.mxu0
        %v459 = vadd.f32 %v417, %v458
        %v460 = vpop.f32.mrf.mxu0
        %v461 = vadd.f32 %v417, %v460
        %462 = vmatmul.bf16.gmra.mxu0 %v439
        %v463 = vpop.f32.mrf.mxu0
        %v464 = vadd.f32 %v417, %v463
        %v465 = vpop.f32.mrf.mxu0
        %v466 = vadd.f32 %v417, %v465
        %467 = vmatmul.bf16.gmra.mxu0 %v442
        %v468 = vpop.f32.mrf.mxu0
        %v469 = vadd.f32 %v417, %v468
        %v470 = vpop.f32.mrf.mxu0
        %v471 = vadd.f32 %v417, %v470
        %472 = vdwg.mxu0
        %v473 = vsel %vm290, 1, 0
        %v474 = vsel %vm291, 1, 0
        %v475 = vsel %vm292, 1, 0
        %v476 = vsel %vm293, 1, 0
        %v477 = vsel %vm294, 1, 0
        %v478 = vsel %vm295, 1, 0
        %v479 = vsel %vm296, 1, 0
        %v480 = vsel %vm297, 1, 0
        %vm481 = vcmp.eq.s32.totalorder %v473, 1
        %vm482 = vcmp.eq.s32.totalorder %v474, 1
        %vm483 = vcmp.eq.s32.totalorder %v475, 1
        %vm484 = vcmp.eq.s32.totalorder %v476, 1
        %vm485 = vcmp.eq.s32.totalorder %v477, 1
        %vm486 = vcmp.eq.s32.totalorder %v478, 1
        %vm487 = vcmp.eq.s32.totalorder %v479, 1
        %vm488 = vcmp.eq.s32.totalorder %v480, 1
        %v489 = vsel %vm481, -9e+15, %v454
        %v490 = vsel %vm482, -9e+15, %v456
        %v491 = vsel %vm483, -9e+15, %v459
        %v492 = vsel %vm484, -9e+15, %v461
        %v493 = vsel %vm485, -9e+15, %v464
        %v494 = vsel %vm486, -9e+15, %v466
        %v495 = vsel %vm487, -9e+15, %v469
        %v496 = vsel %vm488, -9e+15, %v471
        %vm497 = vcmask 31744
        %498 = vst.msk [vmem:[%s247] sm:$0xff] %vm497, %v489
        %499 = vst.msk [vmem:[%s247 + $0x8] sm:$0xff] %vm497, %v490
        %500 = vst.msk [vmem:[%s247 + $0x10] sm:$0xff] %vm497, %v491
        %501 = vst.msk [vmem:[%s247 + $0x18] sm:$0xff] %vm497, %v492
        %502 = vst.msk [vmem:[%s247 + $0x20] sm:$0xff] %vm497, %v493
        %503 = vst.msk [vmem:[%s247 + $0x28] sm:$0xff] %vm497, %v494
        %504 = vst.msk [vmem:[%s247 + $0x30] sm:$0xff] %vm497, %v495
        %505 = vst.msk [vmem:[%s247 + $0x38] sm:$0xff] %vm497, %v496
        %s506 = smul.u32 8, %s19
        %p507 = scmp.lt.s32.totalorder %s506, 31
        %s508 = scalar_select %p507, %s506, 31
        %s509 = smul.addr %s508, 8
        %s510 = scalar_lea.vmem %s5, %s509
        // Predicated region
        $region45: #{tpu_custom_call.1} parent=39 // pred_check
          %p511 = pneg %p147
        $region46: #{tpu_custom_call.1} parent=39 // pred_check_branch
          %513 = sbr.rel (%p511) target = $region48
        $region47: #{tpu_custom_call.1} parent=39 // pred_region
          %s514 = smul.u32 8, %s19
        $region48: #{tpu_custom_call.1} parent=39 // pred_fallthru
          _
      $region40: #{tpu_custom_call.1} parent=5 // pred_fallthru
        _
      %p515 = scmp.le.s32.totalorder 2, %s14
      // Predicated region
      $region49: #{tpu_custom_call.1} parent=5 // pred_check
        %p516 = pneg %p515
      $region50: #{tpu_custom_call.1} parent=5 // pred_check_branch
        %518 = sbr.rel (%p516) target = $region52
      $region51: #{tpu_custom_call.1} parent=5 // pred_region
        %s519 = ssub.s32 %s14, 2
        // Predicated region
        $region53: #{tpu_custom_call.1} parent=51 // pred_check
          %p520 = pneg %p153
        $region54: #{tpu_custom_call.1} parent=51 // pred_check_branch
          %522 = sbr.rel (%p520) target = $region56
        $region55: #{tpu_custom_call.1} parent=51 // pred_region
          %s523 = smul.u32 8, %s20
          %p524 = scmp.lt.s32.totalorder %s523, 31
          %s525 = scalar_select %p524, %s523, 31
          %s526 = smul.addr %s525, 8
          %s527 = scalar_lea.vmem %s5, %s526
        $region56: #{tpu_custom_call.1} parent=51 // pred_fallthru
          _
      $region52: #{tpu_custom_call.1} parent=5 // pred_fallthru
        _
    $region6: #{tpu_custom_call.1} parent=1 // loop_footer
      %s18 = sadd.s32 1, %s14
    $region7: #{tpu_custom_call.1} parent=1 // loop_footer_branch
      %13 = sbr.rel target = $region3
    $region8: #{tpu_custom_call.1} parent=1 // loop_exit
      _
    %528 = vsyncpa [#allocation3], 1
    %s529 = scalar_lea.sflag [#allocation3], 1
    %530 = vsyncpa %s529, 1

</llo_original>
